<compile_context>
chip_gen: v7x
topology: tpu7x:2x2x1
jax: 0.10.0
libtpu: 0.0.40
codegen_flags: <defaults>
</compile_context>

<pallas_src>
import functools

import jax
import jax.numpy as jnp
from jax import lax
from jax.experimental import pallas as pl
from jax.experimental.pallas import tpu as pltpu

KH = KW = 3  # 3x3 conv, padding = 1


def _up_cat_conv3x3_kernel(x_ref, skip_ref, gather_ref, w_ref, b_ref, o_ref,
                           padbuf_ref, *, width, compute_dtype):
    # x_ref:      (1, Cin,   H*W)        low-res input, flattened spatial on lanes
    # skip_ref:   (1, Cskip, Ho*Wo)      skip connection, flattened spatial on lanes
    # gather_ref: (H*W, Ho*Wo)           constant 0/1 nearest-upsample matrix
    # w_ref:      (Cout, KH*KW*Ccat)     packed conv weight (tap-major, channel-minor)
    # b_ref:      (Cout, 1)              bias (f32)
    # o_ref:      (1, Cout, Ho*Wo)       lane-dense output block
    # padbuf_ref: VMEM (Ccat, Ho*Wo + 2*(Wo+1)), compute_dtype scratch (padded image)
    cin, hw = x_ref.shape[1], x_ref.shape[2]
    cskip, n = skip_ref.shape[1], skip_ref.shape[2]
    h = hw // width
    ho, wo = 2 * h, 2 * width
    ccat = cin + cskip
    pad = wo + 1  # zero slack so the +/-1 row taps read zeros at the image edges

    # ---- nearest-neighbour 2x upsample of x as ONE small MXU matmul against the
    #      precomputed 0/1 gather matrix, directly in the flattened
    #      (channels, Ho*Wo) layout (no lane<->sublane relayouts, no HBM pass).
    up2 = jnp.dot(x_ref[0].astype(compute_dtype), gather_ref[...],
                  preferred_element_type=jnp.float32)          # (Cin, N) f32

    # ---- channel concat (up || skip) on sublanes, single cast to compute dtype.
    cat2 = jnp.concatenate(
        [up2.astype(compute_dtype), skip_ref[0].astype(compute_dtype)], axis=0)

    # ---- zero-slack copy in VMEM scratch: taps that fall outside the image rows
    #      land in the zero pads, so only left/right column edges need masks.
    #      Only the two pad strips need zeroing (data region is fully rewritten).
    padbuf_ref[:, 0:pad] = jnp.zeros((ccat, pad), compute_dtype)
    padbuf_ref[:, pad + n:] = jnp.zeros((ccat, pad), compute_dtype)
    padbuf_ref[:, pad:pad + n] = cat2

    # ---- im2col: build the (9*Ccat, N) patch matrix once, then one MXU matmul.
    xcol = lax.broadcasted_iota(jnp.int32, (ccat, n), 1) % wo
    left_ok = xcol >= 1           # output column x=0 has no left neighbour
    right_ok = xcol <= wo - 2     # output column x=Wo-1 has no right neighbour
    taps = []
    for dy in range(KH):
        for dx in range(KW):
            start = pad + (dy - 1) * wo + (dx - 1)
            win = padbuf_ref[:, start:start + n]               # (Ccat, N)
            if dx == 0:
                win = jnp.where(left_ok, win, 0)
            elif dx == 2:
                win = jnp.where(right_ok, win, 0)
            taps.append(win)
    patches = jnp.concatenate(taps, axis=0)                    # (9*Ccat, N)

    # ---- conv = single (Cout, 9*Ccat) x (9*Ccat, N) matmul + bias + ReLU.
    acc = jnp.dot(w_ref[...], patches, preferred_element_type=jnp.float32)
    acc = jnp.maximum(acc + b_ref[...], 0.0)
    o_ref[0] = acc.astype(o_ref.dtype)                         # lane-dense store


def up_conv_generic(x_nchw, skip_nchw, w_hwio, bias, *,
                    compute_dtype=jnp.bfloat16):
    """Full UpConvGeneric forward. Inputs/outputs in NCHW (PyTorch layout)."""
    b, cin, h, w = x_nchw.shape
    bs, cskip, ho, wo = skip_nchw.shape
    assert bs == b and ho == 2 * h and wo == 2 * w
    kh, kw, ccat, cout = w_hwio.shape
    assert (kh, kw) == (KH, KW) and ccat == cin + cskip
    hw, n = h * w, ho * wo

    # Free (metadata-only) trailing-dim reshapes: kernel stays NCHW-native.
    x2 = x_nchw.reshape(b, cin, hw)
    skip2 = skip_nchw.reshape(b, cskip, n)

    # Constant 0/1 nearest-upsample gather matrix (H*W, Ho*Wo): built once at
    # trace time, DMA'd into VMEM once (constant index_map), shared by all
    # batches.  out[:, oy*Wo+ox] = in[:, (oy//2)*W + ox//2].
    # TODO(synk): for large spatial sizes this matrix is O((H*W)^2); switch to a
    # 4-phase (sub-pixel) conv decomposition there instead.
    src = jnp.arange(hw, dtype=jnp.int32)[:, None]
    dst = jnp.arange(n, dtype=jnp.int32)[None, :]
    gather = ((dst // wo // 2) * w + (dst % wo) // 2 == src).astype(compute_dtype)

    # Pack weights once into a lane-friendly (Cout, KH*KW*Ccat) matrix whose
    # column order matches the in-kernel im2col (tap-major, channel-minor).
    w2 = jnp.transpose(w_hwio, (3, 0, 1, 2)).reshape(cout, kh * kw * ccat)
    w2 = w2.astype(compute_dtype)
    b2 = bias.reshape(cout, 1).astype(jnp.float32)

    out_flat = pl.pallas_call(
        functools.partial(_up_cat_conv3x3_kernel,
                          width=w, compute_dtype=compute_dtype),
        out_shape=jax.ShapeDtypeStruct((b, cout, n), x_nchw.dtype),
        grid_spec=pltpu.PrefetchScalarGridSpec(
            num_scalar_prefetch=0,
            grid=(b,),
            in_specs=[
                pl.BlockSpec((1, cin, hw), lambda i: (i, 0, 0)),
                pl.BlockSpec((1, cskip, n), lambda i: (i, 0, 0)),
                pl.BlockSpec((hw, n), lambda i: (0, 0)),
                pl.BlockSpec((cout, kh * kw * ccat), lambda i: (0, 0)),
                pl.BlockSpec((cout, 1), lambda i: (0, 0)),
            ],
            out_specs=pl.BlockSpec((1, cout, n), lambda i: (i, 0, 0)),
            scratch_shapes=[
                pltpu.VMEM((ccat, n + 2 * (wo + 1)), compute_dtype)],
        ),
        compiler_params=pltpu.CompilerParams(
            dimension_semantics=("parallel",),
            vmem_limit_bytes=64 * 1024 * 1024),
    )(x2, skip2, gather, w2, b2)
    # TODO(synk): for large spatial sizes add a second parallel grid axis over
    # output-row tiles (1-row halo) so double-buffered tiles stay inside v7x's
    # 64 MiB VMEM and both TensorCores get work; at these sizes one image per
    # grid step fits easily.
    return out_flat.reshape(b, cout, ho, wo)


def _reference(x_nchw, skip_nchw, w_hwio, bias, compute_dtype):
    """Pure-JAX reference (same math, XLA conv) for a sanity check."""
    up = jnp.repeat(jnp.repeat(x_nchw, 2, axis=2), 2, axis=3)
    cat = jnp.concatenate([up, skip_nchw], axis=1)
    cat_nhwc = jnp.transpose(cat, (0, 2, 3, 1)).astype(compute_dtype)
    y = jax.lax.conv_general_dilated(
        cat_nhwc, w_hwio.astype(compute_dtype),
        window_strides=(1, 1), padding="SAME",
        dimension_numbers=("NHWC", "HWIO", "NHWC"),
        preferred_element_type=jnp.float32)
    y = jnp.maximum(y + bias[None, None, None, :].astype(jnp.float32), 0.0)
    return jnp.transpose(y, (0, 3, 1, 2)).astype(x_nchw.dtype)


if __name__ == "__main__":
    key = jax.random.PRNGKey(0)
    k_x, k_skip, k_w, k_b = jax.random.split(key, 4)

    B, C_in, H, W = 2, 4, 8, 8          # low-res input to the up block
    C_skip = 4                           # skip connection channels
    C_cat = C_in + C_skip                # channels after concat
    C_out = 8                            # conv_block output channels

    x = jax.random.normal(k_x, (B, C_in, H, W), jnp.float32)
    skip_x = jax.random.normal(k_skip, (B, C_skip, 2 * H, 2 * W), jnp.float32)

    # Conv2d(C_cat, C_out, 3, padding=1) parameters, stored in HWIO layout.
    w = jax.random.normal(k_w, (KH, KW, C_cat, C_out), jnp.float32) * 0.1
    b = jax.random.normal(k_b, (C_out,), jnp.float32) * 0.1

    # Default path: bf16 MXU inputs, f32 accumulation.
    out_bf16 = jax.block_until_ready(up_conv_generic(x, skip_x, w, b))
    ref_bf16 = jax.block_until_ready(_reference(x, skip_x, w, b, jnp.bfloat16))
    assert out_bf16.shape == (B, C_out, 2 * H, 2 * W), out_bf16.shape
    assert jnp.allclose(out_bf16, ref_bf16, atol=2e-2, rtol=2e-2), \
        float(jnp.max(jnp.abs(out_bf16 - ref_bf16)))

    # Precision knob: full f32 path.
    out_f32 = jax.block_until_ready(
        up_conv_generic(x, skip_x, w, b, compute_dtype=jnp.float32))
    ref_f32 = jax.block_until_ready(_reference(x, skip_x, w, b, jnp.float32))
    assert jnp.allclose(out_f32, ref_f32, atol=3e-2, rtol=3e-2), \
        float(jnp.max(jnp.abs(out_f32 - ref_f32)))

    print("KERNEL_OK")
</pallas_src>

<mosaic_0001>
module attributes {stable_mosaic.version = 11 : i64} {
  func.func @_up_cat_conv3x3_kernel(%arg0: i32, %arg1: memref<1x4x64xf32, #tpu.memory_space<vmem>>, %arg2: memref<1x4x256xf32, #tpu.memory_space<vmem>>, %arg3: memref<64x256xbf16, #tpu.memory_space<vmem>>, %arg4: memref<8x72xbf16, #tpu.memory_space<vmem>>, %arg5: memref<8x1xf32, #tpu.memory_space<vmem>>, %arg6: memref<1x8x256xf32, #tpu.memory_space<vmem>>, %arg7: memref<8x290xbf16, #tpu.memory_space<vmem>>) attributes {dimension_semantics = [#tpu.dimension_semantics<parallel>], iteration_bounds = array<i64: 2>, scalar_prefetch = 0 : i64, scratch_operands = 1 : i64, tpu.core_type = #tpu.core_type<tc>, window_params = [{transform_indices = @transform_0, window_bounds = array<i64: 1, 4, 64>}, {transform_indices = @transform_1, window_bounds = array<i64: 1, 4, 256>}, {pipeline_mode = #tpu.pipeline_mode<synchronous>, transform_indices = @transform_2, window_bounds = array<i64: 64, 256>}, {pipeline_mode = #tpu.pipeline_mode<synchronous>, transform_indices = @transform_3, window_bounds = array<i64: 8, 72>}, {pipeline_mode = #tpu.pipeline_mode<synchronous>, transform_indices = @transform_4, window_bounds = array<i64: 8, 1>}, {transform_indices = @transform_5, window_bounds = array<i64: 1, 8, 256>}]} {
    %c0 = arith.constant 0 : index
    %c0_0 = arith.constant 0 : index
    %c0_1 = arith.constant 0 : index
    %0 = vector.load %arg1[%c0, %c0_0, %c0_1] : memref<1x4x64xf32, #tpu.memory_space<vmem>>, vector<1x4x64xf32>
    %1 = vector.shape_cast %0 : vector<1x4x64xf32> to vector<4x64xf32>
    %2 = arith.truncf %1 : vector<4x64xf32> to vector<4x64xbf16>
    %c0_2 = arith.constant 0 : index
    %c0_3 = arith.constant 0 : index
    %3 = vector.load %arg3[%c0_2, %c0_3] : memref<64x256xbf16, #tpu.memory_space<vmem>>, vector<64x256xbf16>
    %cst = arith.constant dense<0.000000e+00> : vector<4x256xf32>
    %4 = tpu.matmul %2, %3, %cst {dimension_numbers = #tpu.dot_dimension_numbers<[1], [0], [0], [1], [0, 0, 1, 1], [], []>} : vector<4x64xbf16>, vector<64x256xbf16>, vector<4x256xf32> -> vector<4x256xf32>
    %5 = arith.truncf %4 : vector<4x256xf32> to vector<4x256xbf16>
    %c0_4 = arith.constant 0 : index
    %c0_5 = arith.constant 0 : index
    %c0_6 = arith.constant 0 : index
    %6 = vector.load %arg2[%c0_4, %c0_5, %c0_6] : memref<1x4x256xf32, #tpu.memory_space<vmem>>, vector<1x4x256xf32>
    %7 = vector.shape_cast %6 : vector<1x4x256xf32> to vector<4x256xf32>
    %8 = arith.truncf %7 : vector<4x256xf32> to vector<4x256xbf16>
    %9 = tpu.concatenate %5, %8 in 0 : vector<4x256xbf16>, vector<4x256xbf16> -> vector<8x256xbf16>
    %cst_7 = arith.constant 0.000000e+00 : bf16
    %10 = vector.broadcast %cst_7 : bf16 to vector<8x17xbf16>
    %c0_8 = arith.constant 0 : index
    %c0_9 = arith.constant 0 : index
    %11 = vector.load %arg7[%c0_8, %c0_9] : memref<8x290xbf16, #tpu.memory_space<vmem>>, vector<8x17xbf16>
    tpu.vector_store %arg7[%c0_8, %c0_9], %10 {strides = array<i32>} : memref<8x290xbf16, #tpu.memory_space<vmem>>, vector<8x17xbf16>,
    %cst_10 = arith.constant 0.000000e+00 : bf16
    %12 = vector.broadcast %cst_10 : bf16 to vector<8x17xbf16>
    %c0_11 = arith.constant 0 : index
    %c273 = arith.constant 273 : index
    %13 = vector.load %arg7[%c0_11, %c273] : memref<8x290xbf16, #tpu.memory_space<vmem>>, vector<8x17xbf16>
    tpu.vector_store %arg7[%c0_11, %c273], %12 {strides = array<i32>} : memref<8x290xbf16, #tpu.memory_space<vmem>>, vector<8x17xbf16>,
    %c0_12 = arith.constant 0 : index
    %c17 = arith.constant 17 : index
    %14 = vector.load %arg7[%c0_12, %c17] : memref<8x290xbf16, #tpu.memory_space<vmem>>, vector<8x256xbf16>
    tpu.vector_store %arg7[%c0_12, %c17], %9 {strides = array<i32>} : memref<8x290xbf16, #tpu.memory_space<vmem>>, vector<8x256xbf16>,
    %15 = tpu.iota {dimensions = array<i32: 1>} : vector<8x256xi32>
    %c16_i32 = arith.constant 16 : i32
    %c0_i32 = arith.constant 0 : i32
    %16 = arith.cmpi eq, %c16_i32, %c0_i32 : i32
    %c1_i32 = arith.constant 1 : i32
    %17 = arith.select %16, %c1_i32, %c16_i32 : i32
    %18 = vector.broadcast %17 : i32 to vector<8x256xi32>
    %19 = arith.remsi %15, %18 : vector<8x256xi32>
    %c0_i32_13 = arith.constant 0 : i32
    %20 = vector.broadcast %c0_i32_13 : i32 to vector<8x256xi32>
    %21 = arith.cmpi ne, %19, %20 : vector<8x256xi32>
    %c0_i32_14 = arith.constant 0 : i32
    %22 = vector.broadcast %c0_i32_14 : i32 to vector<8x256xi32>
    %23 = arith.cmpi slt, %19, %22 : vector<8x256xi32>
    %c0_i32_15 = arith.constant 0 : i32
    %24 = arith.cmpi slt, %17, %c0_i32_15 : i32
    %25 = vector.broadcast %24 : i1 to vector<8x256xi1>
    %26 = vector.broadcast %25 : vector<8x256xi1> to vector<8x256xi1>
    %27 = arith.xori %23, %26 : vector<8x256xi1>
    %28 = arith.andi %27, %21 : vector<8x256xi1>
    %29 = vector.broadcast %17 : i32 to vector<8x256xi32>
    %30 = arith.addi %19, %29 : vector<8x256xi32>
    %31 = arith.select %28, %30, %19 : vector<8x256xi1>, vector<8x256xi32>
    %c1_i32_16 = arith.constant 1 : i32
    %32 = vector.broadcast %c1_i32_16 : i32 to vector<8x256xi32>
    %33 = arith.cmpi sge, %31, %32 : vector<8x256xi32>
    %c14_i32 = arith.constant 14 : i32
    %34 = vector.broadcast %c14_i32 : i32 to vector<8x256xi32>
    %35 = arith.cmpi sle, %31, %34 : vector<8x256xi32>
    %c0_17 = arith.constant 0 : index
    %c0_18 = arith.constant 0 : index
    %36 = vector.load %arg7[%c0_17, %c0_18] : memref<8x290xbf16, #tpu.memory_space<vmem>>, vector<8x256xbf16>
    %c0_i32_19 = arith.constant 0 : i32
    %37 = arith.sitofp %c0_i32_19 : i32 to bf16
    %38 = vector.broadcast %37 : bf16 to vector<8x256xbf16>
    %39 = arith.select %33, %36, %38 : vector<8x256xi1>, vector<8x256xbf16>
    %c0_20 = arith.constant 0 : index
    %c1 = arith.constant 1 : index
    %40 = vector.load %arg7[%c0_20, %c1] : memref<8x290xbf16, #tpu.memory_space<vmem>>, vector<8x256xbf16>
    %c0_21 = arith.constant 0 : index
    %c2 = arith.constant 2 : index
    %41 = vector.load %arg7[%c0_21, %c2] : memref<8x290xbf16, #tpu.memory_space<vmem>>, vector<8x256xbf16>
    %c0_i32_22 = arith.constant 0 : i32
    %42 = arith.sitofp %c0_i32_22 : i32 to bf16
    %43 = vector.broadcast %42 : bf16 to vector<8x256xbf16>
    %44 = arith.select %35, %41, %43 : vector<8x256xi1>, vector<8x256xbf16>
    %c0_23 = arith.constant 0 : index
    %c16 = arith.constant 16 : index
    %45 = vector.load %arg7[%c0_23, %c16] : memref<8x290xbf16, #tpu.memory_space<vmem>>, vector<8x256xbf16>
    %c0_i32_24 = arith.constant 0 : i32
    %46 = arith.sitofp %c0_i32_24 : i32 to bf16
    %47 = vector.broadcast %46 : bf16 to vector<8x256xbf16>
    %48 = arith.select %33, %45, %47 : vector<8x256xi1>, vector<8x256xbf16>
    %c0_25 = arith.constant 0 : index
    %c17_26 = arith.constant 17 : index
    %49 = vector.load %arg7[%c0_25, %c17_26] : memref<8x290xbf16, #tpu.memory_space<vmem>>, vector<8x256xbf16>
    %c0_27 = arith.constant 0 : index
    %c18 = arith.constant 18 : index
    %50 = vector.load %arg7[%c0_27, %c18] : memref<8x290xbf16, #tpu.memory_space<vmem>>, vector<8x256xbf16>
    %c0_i32_28 = arith.constant 0 : i32
    %51 = arith.sitofp %c0_i32_28 : i32 to bf16
    %52 = vector.broadcast %51 : bf16 to vector<8x256xbf16>
    %53 = arith.select %35, %50, %52 : vector<8x256xi1>, vector<8x256xbf16>
    %c0_29 = arith.constant 0 : index
    %c32 = arith.constant 32 : index
    %54 = vector.load %arg7[%c0_29, %c32] : memref<8x290xbf16, #tpu.memory_space<vmem>>, vector<8x256xbf16>
    %c0_i32_30 = arith.constant 0 : i32
    %55 = arith.sitofp %c0_i32_30 : i32 to bf16
    %56 = vector.broadcast %55 : bf16 to vector<8x256xbf16>
    %57 = arith.select %33, %54, %56 : vector<8x256xi1>, vector<8x256xbf16>
    %c0_31 = arith.constant 0 : index
    %c33 = arith.constant 33 : index
    %58 = vector.load %arg7[%c0_31, %c33] : memref<8x290xbf16, #tpu.memory_space<vmem>>, vector<8x256xbf16>
    %c0_32 = arith.constant 0 : index
    %c34 = arith.constant 34 : index
    %59 = vector.load %arg7[%c0_32, %c34] : memref<8x290xbf16, #tpu.memory_space<vmem>>, vector<8x256xbf16>
    %c0_i32_33 = arith.constant 0 : i32
    %60 = arith.sitofp %c0_i32_33 : i32 to bf16
    %61 = vector.broadcast %60 : bf16 to vector<8x256xbf16>
    %62 = arith.select %35, %59, %61 : vector<8x256xi1>, vector<8x256xbf16>
    %63 = tpu.concatenate %39, %40, %44, %48, %49, %53, %57, %58, %62 in 0 : vector<8x256xbf16>, vector<8x256xbf16>, vector<8x256xbf16>, vector<8x256xbf16>, vector<8x256xbf16>, vector<8x256xbf16>, vector<8x256xbf16>, vector<8x256xbf16>, vector<8x256xbf16> -> vector<72x256xbf16>
    %c0_34 = arith.constant 0 : index
    %c0_35 = arith.constant 0 : index
    %64 = vector.load %arg4[%c0_34, %c0_35] : memref<8x72xbf16, #tpu.memory_space<vmem>>, vector<8x72xbf16>
    %cst_36 = arith.constant dense<0.000000e+00> : vector<8x256xf32>
    %65 = tpu.matmul %64, %63, %cst_36 {dimension_numbers = #tpu.dot_dimension_numbers<[1], [0], [0], [1], [0, 0, 1, 1], [], []>} : vector<8x72xbf16>, vector<72x256xbf16>, vector<8x256xf32> -> vector<8x256xf32>
    %c0_37 = arith.constant 0 : index
    %c0_38 = arith.constant 0 : index
    %66 = vector.load %arg5[%c0_37, %c0_38] : memref<8x1xf32, #tpu.memory_space<vmem>>, vector<8x1xf32>
    %67 = vector.broadcast %66 : vector<8x1xf32> to vector<8x256xf32>
    %68 = arith.addf %65, %67 : vector<8x256xf32>
    %cst_39 = arith.constant 0.000000e+00 : f32
    %69 = vector.broadcast %cst_39 : f32 to vector<8x256xf32>
    %70 = arith.maximumf %68, %69 : vector<8x256xf32>
    %c0_40 = arith.constant 0 : index
    %c0_41 = arith.constant 0 : index
    %c0_42 = arith.constant 0 : index
    %71 = vector.load %arg6[%c0_40, %c0_41, %c0_42] : memref<1x8x256xf32, #tpu.memory_space<vmem>>, vector<1x8x256xf32>
    %72 = vector.shape_cast %71 : vector<1x8x256xf32> to vector<8x256xf32>
    %73 = vector.shape_cast %70 : vector<8x256xf32> to vector<1x8x256xf32>
    tpu.vector_store %arg6[%c0_40, %c0_41, %c0_42], %73 {strides = array<i32>} : memref<1x8x256xf32, #tpu.memory_space<vmem>>, vector<1x8x256xf32>,
    return
  }
  func.func @transform_0(%arg0: i32) -> (i32, i32, i32) {
    %c0_i32 = arith.constant 0 : i32
    %c0_i32_0 = arith.constant 0 : i32
    %c0_i32_1 = arith.constant 0 : i32
    return %arg0, %c0_i32, %c0_i32_0 : i32, i32, i32
  }
  func.func @transform_1(%arg0: i32) -> (i32, i32, i32) {
    %c0_i32 = arith.constant 0 : i32
    %c0_i32_0 = arith.constant 0 : i32
    %c0_i32_1 = arith.constant 0 : i32
    return %arg0, %c0_i32, %c0_i32_0 : i32, i32, i32
  }
  func.func @transform_2(%arg0: i32) -> (i32, i32) {
    %c0_i32 = arith.constant 0 : i32
    %c0_i32_0 = arith.constant 0 : i32
    %c0_i32_1 = arith.constant 0 : i32
    return %c0_i32, %c0_i32_0 : i32, i32
  }
  func.func @transform_3(%arg0: i32) -> (i32, i32) {
    %c0_i32 = arith.constant 0 : i32
    %c0_i32_0 = arith.constant 0 : i32
    %c0_i32_1 = arith.constant 0 : i32
    return %c0_i32, %c0_i32_0 : i32, i32
  }
  func.func @transform_4(%arg0: i32) -> (i32, i32) {
    %c0_i32 = arith.constant 0 : i32
    %c0_i32_0 = arith.constant 0 : i32
    %c0_i32_1 = arith.constant 0 : i32
    return %c0_i32, %c0_i32_0 : i32, i32
  }
  func.func @transform_5(%arg0: i32) -> (i32, i32, i32) {
    %c0_i32 = arith.constant 0 : i32
    %c0_i32_0 = arith.constant 0 : i32
    %c0_i32_1 = arith.constant 0 : i32
    return %arg0, %c0_i32, %c0_i32_0 : i32, i32, i32
  }
}

</mosaic_0001>

<llo_original>
// kernel: tpu_custom_call.1
$region0: #{tpu_custom_call.1}
  #allocation0 [shape = 'u32[]', space=smem, size = 0x4, offset = 0x4, fixed_abs, tag = 'smem constant byte address 0x4 - core index']
  #allocation1 [shape = 'u32[144,128]{1,0:T(1,128)}', space=vmem, size = 0x12000, scoped, tag = 'internal scratch']
  #allocation2 [shape = 'bf16[8,290]{1,0:T(8,128)(2,1)}', space=vmem, size = 0x1800, scoped, tag = 'scratch operand']
  %s0 = inlined_call_operand.hbm [shape: f32[2,4,64], index: 0, kind: input, shape index: {}]
  %s1 = inlined_call_operand.hbm [shape: f32[2,4,256], index: 1, kind: input, shape index: {}]
  %s2 = inlined_call_operand.hbm [shape: bf16[64,256], index: 2, kind: input, shape index: {}]
  %s3 = inlined_call_operand.hbm [shape: bf16[8,72], index: 3, kind: input, shape index: {}]
  %s4 = inlined_call_operand.hbm [shape: f32[8,1], index: 4, kind: input, shape index: {}]
  %s5 = inlined_call_operand.hbm [shape: f32[2,8,256], index: 5, kind: output, shape index: {}]
  %s6 = sld [smem:[#allocation0]]
  $region73: #{tpu_custom_call.1} parent=0
    _
  %s8 = ssub.s32 1, %s6
  %s9 = scalar_select 0, %s8, %s6
  $region1: #{tpu_custom_call.1} parent=0
    #allocation3 [shape = 'u8[4096]{0}', space=vmem, size = 0x1000, scoped, tag = 'input window, operand 0']
    #allocation4 [shape = 's32[2]{0}', space=sflag, size = 0x8, scoped, tag = 'scoped memory for tpu_custom_call.1']
    #allocation5 [shape = 's32[2]{0}', space=sflag, size = 0x8, scoped, tag = 'scoped memory for tpu_custom_call.1']
    #allocation6 [shape = 'u8[8192]{0}', space=vmem, size = 0x2000, scoped, tag = 'input window, operand 1']
    #allocation7 [shape = 's32[2]{0}', space=sflag, size = 0x8, scoped, tag = 'scoped memory for tpu_custom_call.1']
    #allocation8 [shape = 'u8[32768]{0}', space=vmem, size = 0x8000, scoped, tag = 'input window, operand 2, single buffered']
    #allocation9 [shape = 'u8[2048]{0}', space=vmem, size = 0x800, scoped, tag = 'input window, operand 3, single buffered']
    #allocation10 [shape = 's32[1]{0}', space=sflag, size = 0x4, scoped, tag = 'scoped memory for tpu_custom_call.1']
    #allocation11 [shape = 'u8[4096]{0}', space=vmem, size = 0x1000, scoped, tag = 'input window, operand 4, single buffered']
    #allocation12 [shape = 'u8[16384]{0}', space=vmem, size = 0x4000, scoped, tag = 'output window, operand 0']
    %10 = vsyncpa [#allocation4], 0
    %s11 = scalar_lea.sflag [#allocation4], 1
    %12 = vsyncpa %s11, 0
    %13 = vsyncpa [#allocation7], 0
    %s14 = scalar_lea.sflag [#allocation7], 1
    %15 = vsyncpa %s14, 0
    %16 = vsyncpa [#allocation10], 0
    %17 = vsyncpa [#allocation5], 0
    %s18 = scalar_lea.sflag [#allocation5], 1
    %19 = vsyncpa %s18, 0
    loop: start=0, step=1, limit=4
    $region2: #{tpu_custom_call.1} parent=1 // loop_pre_header
      _
    $region3: #{tpu_custom_call.1} parent=1 // loop_header
      %s21 = sphi 0, %s25
      %p22 = scmp.ge.s32.totalorder %s21, 4
      %s31 = sphi 0, %s33
      %s34 = sphi 0, %s31
      %s35 = sphi 0, %s34
      %s51 = sphi 0, %s35
      %s57 = sphi 0, %s59
      %s60 = sphi 0, %s57
      %s61 = sphi 0, %s60
      %s77 = sphi 0, %s61
      %s81 = sphi 0, %s81
      %s83 = sphi 0, %s81
      %s84 = sphi 0, %s83
      %s98 = sphi 0, %s84
      %s102 = sphi 0, %s102
      %s104 = sphi 0, %s102
      %s105 = sphi 0, %s104
      %s119 = sphi 0, %s105
      %s123 = sphi 0, %s123
      %s125 = sphi 0, %s123
      %s126 = sphi 0, %s125
      %s140 = sphi 0, %s126
      %s146 = sphi 0, %s148
      %s149 = sphi 0, %s146
      %s150 = sphi 0, %s149
      %s166 = sphi 0, %s150
    $region4: #{tpu_custom_call.1} parent=1 // loop_header_branch
      %24 = sbr.rel (%p22) target = $region8
    $region5: #{tpu_custom_call.1} parent=1 // loop_body
      %s26 = ssub.s32 %s21, 1
      %s27 = ssub.s32 %s21, 2
      %s28 = sadd.s32 %s21, 1
      %s29 = ssub.s32 %s21, %s28
      %p30 = scmp.eq.s32.totalorder %s29, 0
      %s32 = sadd.s32 %s31, 1
      %s33 = scalar_select %p30, %s31, %s32
      %p36 = pneg %p30
      %p37 = scmp.eq.s32.totalorder %s21, 1
      %p38 = por %p36, %p37
      %p39 = scmp.ne.s32.totalorder %s31, %s34
      %p40 = scmp.eq.s32.totalorder %s21, 0
      %p41 = por %p39, %p40
      %p42 = scmp.ne.s32.totalorder %s31, %s34
      %p43 = scmp.eq.s32.totalorder %s26, 1
      %p44 = por %p42, %p43
      %p45 = scmp.ne.s32.totalorder %s34, %s35
      %p46 = scmp.eq.s32.totalorder %s26, 0
      %p47 = por %p45, %p46
      %p48 = scmp.ne.s32.totalorder %s34, %s35
      %p49 = scmp.eq.s32.totalorder %s27, 1
      %p50 = por %p48, %p49
      %p52 = scmp.ne.s32.totalorder %s35, %s51
      %p53 = scmp.eq.s32.totalorder %s27, 0
      %p54 = por %p52, %p53
      %s55 = ssub.s32 %s21, %s28
      %p56 = scmp.eq.s32.totalorder %s55, 0
      %s58 = sadd.s32 %s57, 1
      %s59 = scalar_select %p56, %s57, %s58
      %p62 = pneg %p56
      %p63 = scmp.eq.s32.totalorder %s21, 1
      %p64 = por %p62, %p63
      %p65 = scmp.ne.s32.totalorder %s57, %s60
      %p66 = scmp.eq.s32.totalorder %s21, 0
      %p67 = por %p65, %p66
      %p68 = scmp.ne.s32.totalorder %s57, %s60
      %p69 = scmp.eq.s32.totalorder %s26, 1
      %p70 = por %p68, %p69
      %p71 = scmp.ne.s32.totalorder %s60, %s61
      %p72 = scmp.eq.s32.totalorder %s26, 0
      %p73 = por %p71, %p72
      %p74 = scmp.ne.s32.totalorder %s60, %s61
      %p75 = scmp.eq.s32.totalorder %s27, 1
      %p76 = por %p74, %p75
      %p78 = scmp.ne.s32.totalorder %s61, %s77
      %p79 = scmp.eq.s32.totalorder %s27, 0
      %p80 = por %p78, %p79
      %s82 = sadd.s32 %s81, 1
      %p85 = scmp.eq.s32.totalorder %s21, 1
      %p86 = scmp.ne.s32.totalorder %s81, %s83
      %p87 = scmp.eq.s32.totalorder %s21, 0
      %p88 = por %p86, %p87
      %p89 = scmp.ne.s32.totalorder %s81, %s83
      %p90 = scmp.eq.s32.totalorder %s26, 1
      %p91 = por %p89, %p90
      %p92 = scmp.ne.s32.totalorder %s83, %s84
      %p93 = scmp.eq.s32.totalorder %s26, 0
      %p94 = por %p92, %p93
      %p95 = scmp.ne.s32.totalorder %s83, %s84
      %p96 = scmp.eq.s32.totalorder %s27, 1
      %p97 = por %p95, %p96
      %p99 = scmp.ne.s32.totalorder %s84, %s98
      %p100 = scmp.eq.s32.totalorder %s27, 0
      %p101 = por %p99, %p100
      %s103 = sadd.s32 %s102, 1
      %p106 = scmp.eq.s32.totalorder %s21, 1
      %p107 = scmp.ne.s32.totalorder %s102, %s104
      %p108 = scmp.eq.s32.totalorder %s21, 0
      %p109 = por %p107, %p108
      %p110 = scmp.ne.s32.totalorder %s102, %s104
      %p111 = scmp.eq.s32.totalorder %s26, 1
      %p112 = por %p110, %p111
      %p113 = scmp.ne.s32.totalorder %s104, %s105
      %p114 = scmp.eq.s32.totalorder %s26, 0
      %p115 = por %p113, %p114
      %p116 = scmp.ne.s32.totalorder %s104, %s105
      %p117 = scmp.eq.s32.totalorder %s27, 1
      %p118 = por %p116, %p117
      %p120 = scmp.ne.s32.totalorder %s105, %s119
      %p121 = scmp.eq.s32.totalorder %s27, 0
      %p122 = por %p120, %p121
      %s124 = sadd.s32 %s123, 1
      %p127 = scmp.eq.s32.totalorder %s21, 1
      %p128 = scmp.ne.s32.totalorder %s123, %s125
      %p129 = scmp.eq.s32.totalorder %s21, 0
      %p130 = por %p128, %p129
      %p131 = scmp.ne.s32.totalorder %s123, %s125
      %p132 = scmp.eq.s32.totalorder %s26, 1
      %p133 = por %p131, %p132
      %p134 = scmp.ne.s32.totalorder %s125, %s126
      %p135 = scmp.eq.s32.totalorder %s26, 0
      %p136 = por %p134, %p135
      %p137 = scmp.ne.s32.totalorder %s125, %s126
      %p138 = scmp.eq.s32.totalorder %s27, 1
      %p139 = por %p137, %p138
      %p141 = scmp.ne.s32.totalorder %s126, %s140
      %p142 = scmp.eq.s32.totalorder %s27, 0
      %p143 = por %p141, %p142
      %s144 = ssub.s32 %s21, %s28
      %p145 = scmp.eq.s32.totalorder %s144, 0
      %s147 = sadd.s32 %s146, 1
      %s148 = scalar_select %p145, %s146, %s147
      %p151 = pneg %p145
      %p152 = scmp.eq.s32.totalorder %s21, 1
      %p153 = por %p151, %p152
      %p154 = scmp.ne.s32.totalorder %s146, %s149
      %p155 = scmp.eq.s32.totalorder %s21, 0
      %p156 = por %p154, %p155
      %p157 = scmp.ne.s32.totalorder %s146, %s149
      %p158 = scmp.eq.s32.totalorder %s26, 1
      %p159 = por %p157, %p158
      %p160 = scmp.ne.s32.totalorder %s149, %s150
      %p161 = scmp.eq.s32.totalorder %s26, 0
      %p162 = por %p160, %p161
      %p163 = scmp.ne.s32.totalorder %s149, %s150
      %p164 = scmp.eq.s32.totalorder %s27, 1
      %p165 = por %p163, %p164
      %p167 = scmp.ne.s32.totalorder %s150, %s166
      %p168 = scmp.eq.s32.totalorder %s27, 0
      %p169 = por %p167, %p168
      %p170 = scmp.le.s32.totalorder 1, %s21
      %p171 = scmp.lt.s32.totalorder %s21, 3
      %p172 = pnand %p170, %p171
      %p173 = pneg %p172
      // Predicated region
      $region9: #{tpu_custom_call.1} parent=5 // pred_check
        _
      $region10: #{tpu_custom_call.1} parent=5 // pred_check_branch
        %175 = sbr.rel (%p172) target = $region12
      $region11: #{tpu_custom_call.1} parent=5 // pred_region
        %s176 = ssub.s32 %s21, 1
        // Predicated region
        $region13: #{tpu_custom_call.1} parent=11 // pred_check
          %p177 = pneg %p94
        $region14: #{tpu_custom_call.1} parent=11 // pred_check_branch
          %179 = sbr.rel (%p177) target = $region16
        $region15: #{tpu_custom_call.1} parent=11 // pred_region
          %s181 = ssub.s32 1024, 1024
          %182 = vsyncadd [#allocation7], %s181
          %s183 = sshll.u32 [#allocation8], 4
          %s184 = int_to_ptr.vmem [resolvable:$true] %s183
          %189 = dma.hbm_to_vmem [thread:$0]  %s2, 1024, %s184, [#allocation7], 128, 128, 8
        $region16: #{tpu_custom_call.1} parent=11 // pred_fallthru
          _
        // Predicated region
        $region17: #{tpu_custom_call.1} parent=11 // pred_check
          %p190 = pneg %p115
        $region18: #{tpu_custom_call.1} parent=11 // pred_check_branch
          %192 = sbr.rel (%p190) target = $region20
        $region19: #{tpu_custom_call.1} parent=11 // pred_region
          %s194 = ssub.s32 64, 64
          %195 = vsyncadd [#allocation10], %s194
          %s197 = sshll.u32 [#allocation9], 4
          %s198 = int_to_ptr.vmem [resolvable:$true] %s197
          %200 = dma.hbm_to_vmem [thread:$0]  %s3, 64, %s198, [#allocation10]
        $region20: #{tpu_custom_call.1} parent=11 // pred_fallthru
          _
        // Predicated region
        $region21: #{tpu_custom_call.1} parent=11 // pred_check
          %p201 = pneg %p136
        $region22: #{tpu_custom_call.1} parent=11 // pred_check_branch
          %203 = sbr.rel (%p201) target = $region24
        $region23: #{tpu_custom_call.1} parent=11 // pred_region
          %s205 = ssub.s32 128, 128
          %206 = vsyncadd [#allocation10], %s205
          %s208 = sshll.u32 [#allocation11], 4
          %s209 = int_to_ptr.vmem [resolvable:$true] %s208
          %211 = dma.hbm_to_vmem [thread:$0]  %s4, 128, %s209, [#allocation10]
        $region24: #{tpu_custom_call.1} parent=11 // pred_fallthru
          _
      $region12: #{tpu_custom_call.1} parent=5 // pred_fallthru
        _
      %p212 = scmp.lt.s32.totalorder %s21, 2
      // Predicated region
      $region25: #{tpu_custom_call.1} parent=5 // pred_check
        %p213 = pneg %p212
      $region26: #{tpu_custom_call.1} parent=5 // pred_check_branch
        %215 = sbr.rel (%p213) target = $region28
      $region27: #{tpu_custom_call.1} parent=5 // pred_region
        // Predicated region
        $region29: #{tpu_custom_call.1} parent=27 // pred_check
          %p216 = pneg %p41
        $region30: #{tpu_custom_call.1} parent=27 // pred_check_branch
          %218 = sbr.rel (%p216) target = $region32
        $region31: #{tpu_custom_call.1} parent=27 // pred_region
          %s219 = sand.u32 %s31, 1
          %s220 = scalar_lea.sflag [#allocation4], %s219
          %s221 = sand.u32 %s31, 1
          %s222 = smul.addr %s221, 4
          %s223 = scalar_lea.vmem [#allocation3], %s222
          %s225 = ssub.s32 64, 64
          %226 = vsyncadd %s220, %s225
          %s227 = smul.addr %s21, 64
          %s228 = scalar_lea.hbm %s0, %s227
          %s230 = sshll.u32 %s223, 4
          %s231 = int_to_ptr.vmem [resolvable:$true] %s230
          %233 = dma.hbm_to_vmem [thread:$0]  %s228, 64, %s231, %s220
        $region32: #{tpu_custom_call.1} parent=27 // pred_fallthru
          _
        // Predicated region
        $region33: #{tpu_custom_call.1} parent=27 // pred_check
          %p234 = pneg %p67
        $region34: #{tpu_custom_call.1} parent=27 // pred_check_branch
          %236 = sbr.rel (%p234) target = $region36
        $region35: #{tpu_custom_call.1} parent=27 // pred_region
          %s237 = sand.u32 %s21, 1
          %s238 = scalar_lea.sflag [#allocation7], %s237
          %s239 = sand.u32 %s57, 1
          %s240 = smul.addr %s239, 8
          %s241 = scalar_lea.vmem [#allocation6], %s240
          %s243 = ssub.s32 128, 128
          %244 = vsyncadd %s238, %s243
          %s245 = smul.addr %s21, 2
          %s246 = smul.addr %s245, 64
          %s247 = scalar_lea.hbm %s1, %s246
          %s249 = sshll.u32 %s241, 4
          %s250 = int_to_ptr.vmem [resolvable:$true] %s249
          %252 = dma.hbm_to_vmem [thread:$0]  %s247, 128, %s250, %s238
        $region36: #{tpu_custom_call.1} parent=27 // pred_fallthru
          _
      $region28: #{tpu_custom_call.1} parent=5 // pred_fallthru
        _
      %p253 = scmp.le.s32.totalorder 1, %s21
      %p254 = scmp.lt.s32.totalorder %s21, 3
      %p255 = pnand %p253, %p254
      %p256 = pneg %p255
      // Predicated region
      $region37: #{tpu_custom_call.1} parent=5 // pred_check
        _
      $region38: #{tpu_custom_call.1} parent=5 // pred_check_branch
        %258 = sbr.rel (%p255) target = $region40
      $region39: #{tpu_custom_call.1} parent=5 // pred_region
        %s259 = ssub.s32 %s21, 1
        %s260 = sand.u32 %s34, 1
        %s261 = scalar_lea.sflag [#allocation4], %s260
        %s262 = sand.u32 %s34, 1
        %s263 = smul.addr %s262, 4
        %s264 = scalar_lea.vmem [#allocation3], %s263
        // Predicated region
        $region41: #{tpu_custom_call.1} parent=39 // pred_check
          %p265 = pneg %p47
        $region42: #{tpu_custom_call.1} parent=39 // pred_check_branch
          %267 = sbr.rel (%p265) target = $region44
        $region43: #{tpu_custom_call.1} parent=39 // pred_region
          %268 = dma.done %s261, 64
        $region44: #{tpu_custom_call.1} parent=39 // pred_fallthru
          _
        %s269 = sand.u32 %s26, 1
        %s270 = scalar_lea.sflag [#allocation7], %s269
        %s271 = sand.u32 %s60, 1
        %s272 = smul.addr %s271, 8
        %s273 = scalar_lea.vmem [#allocation6], %s272
        // Predicated region
        $region45: #{tpu_custom_call.1} parent=39 // pred_check
          %p274 = pneg %p73
        $region46: #{tpu_custom_call.1} parent=39 // pred_check_branch
          %276 = sbr.rel (%p274) target = $region48
        $region47: #{tpu_custom_call.1} parent=39 // pred_region
          %277 = dma.done %s270, 128
        $region48: #{tpu_custom_call.1} parent=39 // pred_fallthru
          _
        // Predicated region
        $region49: #{tpu_custom_call.1} parent=39 // pred_check
          %p278 = pneg %p94
        $region50: #{tpu_custom_call.1} parent=39 // pred_check_branch
          %280 = sbr.rel (%p278) target = $region52
        $region51: #{tpu_custom_call.1} parent=39 // pred_region
          %281 = dma.done [#allocation7], 1024
        $region52: #{tpu_custom_call.1} parent=39 // pred_fallthru
          _
        // Predicated region
        $region53: #{tpu_custom_call.1} parent=39 // pred_check
          %p282 = pneg %p115
        $region54: #{tpu_custom_call.1} parent=39 // pred_check_branch
          %284 = sbr.rel (%p282) target = $region56
        $region55: #{tpu_custom_call.1} parent=39 // pred_region
          %285 = dma.done [#allocation10], 64
        $region56: #{tpu_custom_call.1} parent=39 // pred_fallthru
          _
        // Predicated region
        $region57: #{tpu_custom_call.1} parent=39 // pred_check
          %p286 = pneg %p136
        $region58: #{tpu_custom_call.1} parent=39 // pred_check_branch
          %288 = sbr.rel (%p286) target = $region60
        $region59: #{tpu_custom_call.1} parent=39 // pred_region
          %289 = dma.done [#allocation10], 128
        $region60: #{tpu_custom_call.1} parent=39 // pred_fallthru
          _
        %s290 = sand.u32 %s34, 1
        %s291 = scalar_lea.sflag [#allocation4], %s290
        %s292 = sand.u32 %s34, 1
        %s293 = smul.addr %s292, 4
        %s294 = scalar_lea.vmem [#allocation3], %s293
        %p295 = pneg %p47
        %p296 = pneg %p44
        %s297 = sand.u32 %s26, 1
        %s298 = scalar_lea.sflag [#allocation7], %s297
        %s299 = sand.u32 %s60, 1
        %s300 = smul.addr %s299, 8
        %s301 = scalar_lea.vmem [#allocation6], %s300
        %p302 = pneg %p73
        %p303 = pneg %p70
        %p304 = pneg %p94
        %p305 = pneg %p91
        %p306 = pneg %p115
        %p307 = pneg %p112
        %p308 = pneg %p136
        %p309 = pneg %p133
        %p310 = pneg %p162
        %p311 = pneg %p159
        %s312 = sand.u32 %s149, 1
        %s313 = scalar_lea.sflag [#allocation5], %s312
        %s314 = sand.u32 %s149, 1
        %s315 = smul.addr %s314, 16
        %s316 = scalar_lea.vmem [#allocation12], %s315
        %v320 = vld [vmem:[%s264] sm:$0xf]
        %v321 = vpack.c.bf16 %v320, %v320
        %v322 = vld [vmem:[#allocation8] sm:$0xff]
        %v323 = vld [vmem:[#allocation8 + $0x8] sm:$0xff]
        %v324 = vld [vmem:[#allocation8 + $0x10] sm:$0xff]
        %v325 = vld [vmem:[#allocation8 + $0x18] sm:$0xff]
        %v326 = vld [vmem:[#allocation8 + $0x20] sm:$0xff]
        %v327 = vld [vmem:[#allocation8 + $0x28] sm:$0xff]
        %v328 = vld [vmem:[#allocation8 + $0x30] sm:$0xff]
        %v329 = vld [vmem:[#allocation8 + $0x38] sm:$0xff]
        %v338 = vunpack.c.l.b16 %v322
        %v339 = vunpack.c.h.b16 %v322
        %v340 = vunpack.c.l.b16 %v323
        %v341 = vunpack.c.h.b16 %v323
        %v342 = vunpack.c.l.b16 %v324
        %v343 = vunpack.c.h.b16 %v324
        %v344 = vunpack.c.l.b16 %v325
        %v345 = vunpack.c.h.b16 %v325
        %v346 = vunpack.c.l.b16 %v326
        %v347 = vunpack.c.h.b16 %v326
        %v348 = vunpack.c.l.b16 %v327
        %v349 = vunpack.c.h.b16 %v327
        %v350 = vunpack.c.l.b16 %v328
        %v351 = vunpack.c.h.b16 %v328
        %v352 = vunpack.c.l.b16 %v329
        %v353 = vunpack.c.h.b16 %v329
        %v354 = vpack.c.b16 %v340, %v338
        %v355 = vpack.c.b16 %v341, %v339
        %v356 = vpack.c.b16 %v344, %v342
        %v357 = vpack.c.b16 %v345, %v343
        %v358 = vpack.c.b16 %v348, %v346
        %v359 = vpack.c.b16 %v349, %v347
        %v360 = vpack.c.b16 %v352, %v350
        %v361 = vpack.c.b16 %v353, %v351
        %vm370 = vcmask 523264
        %v372 = vsel %vm370, %v321, 0
        %374 = vmatprep.subr.bf16.mxu0 %v355
        %375 = vmatpush1.bf16.msra.mxu0 %v354
        %376 = vmatprep.subr.bf16.mxu0 %v357
        %377 = vmatpush1.bf16.msra.mxu0 %v356
        %378 = vmatprep.subr.bf16.mxu0 %v359
        %379 = vmatpush1.bf16.msra.mxu0 %v358
        %380 = vmatprep.subr.bf16.mxu0 %v361
        %381 = vmatpush1.bf16.msra.mxu0 %v360
        %382 = vmatprep.subr.bf16.mxu0 0
        %383 = vmatpush1.bf16.msra.mxu0 0
        %384 = vmatprep.subr.bf16.mxu0 0
        %385 = vmatpush1.bf16.msra.mxu0 0
        %386 = vmatprep.subr.bf16.mxu0 0
        %387 = vmatpush1.bf16.msra.mxu0 0
        %388 = vmatprep.subr.bf16.mxu0 0
        %389 = vmatpush1.bf16.msra.mxu0 0
        %390 = vmatprep.subr.bf16.mxu0 0
        %391 = vmatpush1.bf16.msra.mxu0 0
        %392 = vmatprep.subr.bf16.mxu0 0
        %393 = vmatpush1.bf16.msra.mxu0 0
        %394 = vmatprep.subr.bf16.mxu0 0
        %395 = vmatpush1.bf16.msra.mxu0 0
        %396 = vmatprep.subr.bf16.mxu0 0
        %397 = vmatpush1.bf16.msra.mxu0 0
        %398 = vmatprep.subr.bf16.mxu0 0
        %399 = vmatpush1.bf16.msra.mxu0 0
        %400 = vmatprep.subr.bf16.mxu0 0
        %401 = vmatpush1.bf16.msra.mxu0 0
        %402 = vmatprep.subr.bf16.mxu0 0
        %403 = vmatpush1.bf16.msra.mxu0 0
        %404 = vmatprep.subr.bf16.mxu0 0
        %405 = vmatpush1.bf16.msra.mxu0 0
        %406 = vmatprep.mubr.bf16.mxu0 0
        %407 = vmatmul.mubr.bf16.gmra.mrb[0].mxu0 %v372
        %v408 = vpop.f32.mrb[0].mxu0
        %v409 = vadd.f32 0.0, %v408
        %v410 = vpop.f32.mrb[0].mxu0
        %v411 = vadd.f32 0.0, %v410
        %v412 = vpop.f32.mrb[0].mxu0
        %v413 = vpop.f32.mrb[0].mxu0
        %414 = vdwg.mxu0
        %v415 = vpack.c.bf16 %v409, %v409
        %v416 = vpack.c.bf16 %v411, %v411
        %v417 = vld [vmem:[%s273] sm:$0xff]
        %v419 = vcombine.high %v417, %v417
        %v421 = vpack.c.bf16 %v417, %v417
        %v422 = vpack.c.bf16 %v419, %v419
        %v425 = vrot.slane %v421, 6
        %v426 = vrot.slane %v422, 6
        %vm427 = vcmask 1041408
        %v430 = vsel %vm427, %v415, %v425
        %v433 = vsel %vm427, %v416, %v426
        %vm434 = vcmask 134144
        %435 = vst.msk [vmem:[#allocation2] sm:$0xf] %vm434, 0
        %vm436 = vcmask 273544
        %437 = vst.msk [vmem:[#allocation2 + $0x8] sm:$0xf] %vm436, 0
        %v440 = vunpack.c.l.b16 %v430
        %v441 = vunpack.c.l.b16 %v433
        %v442 = vpack.c.b16 %v441, %v440
        %443 = vrot.lane.b32.xlu0 %v442, 17
        %v444 = vpop.permute.xlu0 %443
        %v445 = vrot.slane %v444, 4
        %vm446 = vcmask 138240
        %v447 = vsel %vm446, %v445, %v444
        %vm450 = vcmask 1043592
        %vm451 = vcmask 1047556
        %vm452 = vmor %vm451, %vm450
        %453 = vst.msk [vmem:[#allocation2] sm:$0xff] %vm452, %v447
        %454 = vst.msk [vmem:[#allocation2 + $0x8] sm:$0xf] %vm434, %v445
        %v455 = vlaneseq
        %v456 = vand.u32 %v455, 127
        %v457 = vadd.s32 %v456, 128
        %vm458 = vcmp.lt.s32.totalorder %v456, 0
        %v459 = vsub.s32 0, %v456
        %v460 = vsel %vm458, %v459, %v456
        %v461 = vshrl.u32 %v460, 4
        %v462 = vand.u32 %v460, 15
        %v463 = vsub.s32 0, %v462
        %v464 = vsel %vm458, %v463, %v462
        %vm465 = vcmp.lt.s32.totalorder %v457, 0
        %v466 = vsub.s32 0, %v457
        %v467 = vsel %vm465, %v466, %v457
        %v468 = vshrl.u32 %v467, 4
        %v469 = vand.u32 %v467, 15
        %v470 = vsub.s32 0, %v469
        %v471 = vsel %vm465, %v470, %v469
        %vm472 = vcmp.ne.s32.totalorder %v464, 0
        %vm473 = vcmp.ne.s32.totalorder %v471, 0
        %vm474 = vcmp.lt.s32.totalorder %v464, 0
        %vm475 = vcmp.lt.s32.totalorder %v471, 0
        %vm476 = vmand %vm474, %vm472
        %vm477 = vmand %vm475, %vm473
        %v478 = vadd.s32 %v464, 16
        %v479 = vadd.s32 %v471, 16
        %v480 = vsel %vm476, %v478, %v464
        %v481 = vsel %vm477, %v479, %v471
        %vm482 = vcmp.ge.s32.totalorder %v480, 1
        %vm483 = vcmp.ge.s32.totalorder %v481, 1
        %vm484 = vcmp.le.s32.totalorder %v480, 14
        %vm485 = vcmp.le.s32.totalorder %v481, 14
        %v486 = vld [vmem:[#allocation2] sm:$0xff]
        %vm487 = vmpackc.low %vm483, %vm482
        %v488 = vsel %vm487, %v486, 0
        %v489 = vld [vmem:[#allocation2 + $0x8] sm:$0xf]
        %vm490 = vmpackc.low %vm485, %vm484
        %v491 = vsel %vm490, 65537, 0
        %492 = vrot.lane.b32.xlu0 %v491, 2
        %v493 = vpop.permute.xlu0 %492
        %v494 = vrot.slane %v493, 4
        %vm495 = vcmask 15360
        %v496 = vsel %vm495, %v494, %v493
        %vm497 = vcmp.ne.s16.totalorder %v496, 0
        %vm498 = vcmp.ne.s16.totalorder %v494, 0
        %v499 = vsel %vm497, %v486, 0
        %v500 = vsel %vm498, %v489, 0
        %v501 = vsel %vm487, 65537, 0
        %502 = vrot.lane.b32.xlu0 %v501, 16
        %v503 = vpop.permute.xlu0 %502
        %v504 = vrot.slane %v503, 4
        %vm505 = vcmask 130048
        %v506 = vsel %vm505, %v504, %v503
        %vm507 = vcmp.ne.s16.totalorder %v506, 0
        %vm508 = vcmp.ne.s16.totalorder %v504, 0
        %v509 = vsel %vm507, %v486, 0
        %v510 = vsel %vm508, %v489, 0
        %511 = vrot.lane.b32.xlu0 %v491, 18
        %v512 = vpop.permute.xlu0 %511
        %v513 = vrot.slane %v512, 4
        %vm514 = vcmask 146432
        %v515 = vsel %vm514, %v513, %v512
        %vm516 = vcmp.ne.s16.totalorder %v515, 0
        %vm517 = vcmp.ne.s16.totalorder %v513, 0
        %v518 = vsel %vm516, %v486, 0
        %v519 = vsel %vm517, %v489, 0
        %520 = vrot.lane.b32.xlu0 %v501, 32
        %v521 = vpop.permute.xlu0 %520
        %v522 = vrot.slane %v521, 4
        %vm523 = vcmask 261120
        %v524 = vsel %vm523, %v522, %v521
        %vm525 = vcmp.ne.s16.totalorder %v524, 0
        %vm526 = vcmp.ne.s16.totalorder %v522, 0
        %v527 = vsel %vm525, %v486, 0
        %v528 = vsel %vm526, %v489, 0
        %529 = vrot.lane.b32.xlu0 %v491, 34
        %v530 = vpop.permute.xlu0 %529
        %v531 = vrot.slane %v530, 4
        %vm532 = vcmask 277504
        %v533 = vsel %vm532, %v531, %v530
        %vm534 = vcmp.ne.s16.totalorder %v533, 0
        %vm535 = vcmp.ne.s16.totalorder %v531, 0
        %v536 = vsel %vm534, %v486, 0
        %v537 = vsel %vm535, %v489, 0
        %v539 = vunpack.c.l.b16 %v488
        %v540 = vunpack.c.h.b16 %v488
        %v541 = vpack.c.b16 %v539, %v539
        %v542 = vpack.c.b16 %v540, %v540
        %v545 = vunpack.c.l.b16 %v486
        %v546 = vunpack.c.h.b16 %v486
        %v547 = vunpack.c.l.b16 %v489
        %v548 = vpack.c.b16 %v545, %v545
        %v549 = vpack.c.b16 %v546, %v546
        %v550 = vpack.c.b16 %v547, %v547
        %551 = vrot.lane.b32.xlu0 %v548, 127
        %v552 = vpop.permute.xlu0 %551
        %553 = vrot.lane.b32.xlu0 %v549, 127
        %v554 = vpop.permute.xlu0 %553
        %555 = vrot.lane.b32.xlu0 %v550, 127
        %v556 = vpop.permute.xlu0 %555
        %vm557 = vcmask 1039360
        %v558 = vsel %vm557, %v552, %v554
        %v559 = vsel %vm557, %v554, %v556
        %v562 = vunpack.c.l.b16 %v499
        %v563 = vunpack.c.h.b16 %v499
        %v564 = vunpack.c.l.b16 %v500
        %v565 = vpack.c.b16 %v562, %v562
        %v566 = vpack.c.b16 %v563, %v563
        %v567 = vpack.c.b16 %v564, %v564
        %568 = vrot.lane.b32.xlu0 %v565, 126
        %v569 = vpop.permute.xlu0 %568
        %570 = vrot.lane.b32.xlu0 %v566, 126
        %v571 = vpop.permute.xlu0 %570
        %572 = vrot.lane.b32.xlu0 %v567, 126
        %v573 = vpop.permute.xlu0 %572
        %vm574 = vcmask 1031168
        %v575 = vsel %vm574, %v569, %v571
        %v576 = vsel %vm574, %v571, %v573
        %v579 = vunpack.c.l.b16 %v509
        %v580 = vunpack.c.h.b16 %v509
        %v581 = vunpack.c.l.b16 %v510
        %v582 = vpack.c.b16 %v579, %v579
        %v583 = vpack.c.b16 %v580, %v580
        %v584 = vpack.c.b16 %v581, %v581
        %585 = vrot.lane.b32.xlu0 %v582, 112
        %v586 = vpop.permute.xlu0 %585
        %587 = vrot.lane.b32.xlu0 %v583, 112
        %v588 = vpop.permute.xlu0 %587
        %589 = vrot.lane.b32.xlu0 %v584, 112
        %v590 = vpop.permute.xlu0 %589
        %vm591 = vcmask 916480
        %v592 = vsel %vm591, %v586, %v588
        %v593 = vsel %vm591, %v588, %v590
        %594 = vrot.lane.b32.xlu0 %v548, 111
        %v595 = vpop.permute.xlu0 %594
        %596 = vrot.lane.b32.xlu0 %v549, 111
        %v597 = vpop.permute.xlu0 %596
        %598 = vrot.lane.b32.xlu0 %v550, 111
        %v599 = vpop.permute.xlu0 %598
        %vm600 = vcmask 908288
        %v601 = vsel %vm600, %v595, %v597
        %v602 = vsel %vm600, %v597, %v599
        %v605 = vunpack.c.l.b16 %v518
        %v606 = vunpack.c.h.b16 %v518
        %v607 = vunpack.c.l.b16 %v519
        %v608 = vpack.c.b16 %v605, %v605
        %v609 = vpack.c.b16 %v606, %v606
        %v610 = vpack.c.b16 %v607, %v607
        %611 = vrot.lane.b32.xlu0 %v608, 110
        %v612 = vpop.permute.xlu0 %611
        %613 = vrot.lane.b32.xlu0 %v609, 110
        %v614 = vpop.permute.xlu0 %613
        %615 = vrot.lane.b32.xlu0 %v610, 110
        %v616 = vpop.permute.xlu0 %615
        %vm617 = vcmask 900096
        %v618 = vsel %vm617, %v612, %v614
        %v619 = vsel %vm617, %v614, %v616
        %v622 = vunpack.c.l.b16 %v527
        %v623 = vunpack.c.h.b16 %v527
        %v624 = vunpack.c.l.b16 %v528
        %v625 = vpack.c.b16 %v622, %v622
        %v626 = vpack.c.b16 %v623, %v623
        %v627 = vpack.c.b16 %v624, %v624
        %628 = vrot.lane.b32.xlu0 %v625, 96
        %v629 = vpop.permute.xlu0 %628
        %630 = vrot.lane.b32.xlu0 %v626, 96
        %v631 = vpop.permute.xlu0 %630
        %632 = vrot.lane.b32.xlu0 %v627, 96
        %v633 = vpop.permute.xlu0 %632
        %vm634 = vcmask 785408
        %v635 = vsel %vm634, %v629, %v631
        %v636 = vsel %vm634, %v631, %v633
        %637 = vrot.lane.b32.xlu0 %v548, 95
        %v638 = vpop.permute.xlu0 %637
        %639 = vrot.lane.b32.xlu0 %v549, 95
        %v640 = vpop.permute.xlu0 %639
        %641 = vrot.lane.b32.xlu0 %v550, 95
        %v642 = vpop.permute.xlu0 %641
        %vm643 = vcmask 777216
        %v644 = vsel %vm643, %v638, %v640
        %v645 = vsel %vm643, %v640, %v642
        %v648 = vunpack.c.l.b16 %v536
        %v649 = vunpack.c.h.b16 %v536
        %v650 = vunpack.c.l.b16 %v537
        %v651 = vpack.c.b16 %v648, %v648
        %v652 = vpack.c.b16 %v649, %v649
        %v653 = vpack.c.b16 %v650, %v650
        %654 = vrot.lane.b32.xlu0 %v651, 94
        %v655 = vpop.permute.xlu0 %654
        %656 = vrot.lane.b32.xlu0 %v652, 94
        %v657 = vpop.permute.xlu0 %656
        %658 = vrot.lane.b32.xlu0 %v653, 94
        %v659 = vpop.permute.xlu0 %658
        %vm660 = vcmask 769024
        %v661 = vsel %vm660, %v655, %v657
        %v662 = vsel %vm660, %v657, %v659
        %vm663 = vcmask 1043456
        %v666 = vsel %vm663, %v541, %v558
        %v670 = vsel %vm663, %v542, %v559
        %v674 = vsel %vm663, %v575, %v592
        %v678 = vsel %vm663, %v576, %v593
        %v682 = vsel %vm663, %v601, %v618
        %v686 = vsel %vm663, %v602, %v619
        %v690 = vsel %vm663, %v635, %v644
        %v694 = vsel %vm663, %v636, %v645
        %v696 = vld [vmem:[#allocation9] sm:$0xf]
        %v697 = vld [vmem:[#allocation11] sm:$0xff]
        %699 = vset.pattern.permute.xlu0 0
        %700 = vperm.xlu0 %699, %v697
        %v701 = vpop.permute.xlu0 %700
        %vm703 = vcmask 588800
        %v705 = vsel %vm703, %v696, 0
        %v708 = vsel %vm663, %v661, 0
        %v711 = vsel %vm663, %v662, 0
        %713 = vmatprep.subr.bf16.mxu0 %v670
        %714 = vmatpush1.bf16.msra.mxu0 %v666
        %715 = vmatprep.subr.bf16.mxu0 %v678
        %716 = vmatpush1.bf16.msra.mxu0 %v674
        %717 = vmatprep.subr.bf16.mxu0 %v686
        %718 = vmatpush1.bf16.msra.mxu0 %v682
        %719 = vmatprep.subr.bf16.mxu0 %v694
        %720 = vmatpush1.bf16.msra.mxu0 %v690
        %721 = vmatprep.subr.bf16.mxu0 %v711
        %722 = vmatpush1.bf16.msra.mxu0 %v708
        %723 = vmatprep.subr.bf16.mxu0 0
        %724 = vmatpush1.bf16.msra.mxu0 0
        %725 = vmatprep.subr.bf16.mxu0 0
        %726 = vmatpush1.bf16.msra.mxu0 0
        %727 = vmatprep.subr.bf16.mxu0 0
        %728 = vmatpush1.bf16.msra.mxu0 0
        %729 = vmatprep.subr.bf16.mxu0 0
        %730 = vmatpush1.bf16.msra.mxu0 0
        %731 = vmatprep.subr.bf16.mxu0 0
        %732 = vmatpush1.bf16.msra.mxu0 0
        %733 = vmatprep.subr.bf16.mxu0 0
        %734 = vmatpush1.bf16.msra.mxu0 0
        %735 = vmatprep.subr.bf16.mxu0 0
        %736 = vmatpush1.bf16.msra.mxu0 0
        %737 = vmatprep.subr.bf16.mxu0 0
        %738 = vmatpush1.bf16.msra.mxu0 0
        %739 = vmatprep.subr.bf16.mxu0 0
        %740 = vmatpush1.bf16.msra.mxu0 0
        %741 = vmatprep.subr.bf16.mxu0 0
        %742 = vmatpush1.bf16.msra.mxu0 0
        %743 = vmatprep.subr.bf16.mxu0 0
        %744 = vmatpush1.bf16.msra.mxu0 0
        %745 = vmatprep.mubr.bf16.mxu0 0
        %746 = vmatmul.mubr.bf16.gmra.mrb[0].mxu0 %v705
        %v747 = vpop.f32.mrb[0].mxu0
        %v748 = vadd.f32 %v701, %v747
        %v749 = vpop.f32.mrb[0].mxu0
        %v750 = vadd.f32 %v701, %v749
        %v751 = vpop.f32.mrb[0].mxu0
        %v752 = vpop.f32.mrb[0].mxu0
        %753 = vdwg.mxu0
        %v754 = vmax.f32 %v748, 0.0
        %v755 = vmax.f32 %v750, 0.0
        %756 = vst [vmem:[%s316] sm:$0xff] %v754
        %757 = vst [vmem:[%s316 + $0x8] sm:$0xff] %v755
        %s758 = sand.u32 %s149, 1
        %s759 = scalar_lea.sflag [#allocation5], %s758
        %s760 = sand.u32 %s149, 1
        %s761 = smul.addr %s760, 16
        %s762 = scalar_lea.vmem [#allocation12], %s761
        // Predicated region
        $region61: #{tpu_custom_call.1} parent=39 // pred_check
          %p763 = pneg %p159
        $region62: #{tpu_custom_call.1} parent=39 // pred_check_branch
          %765 = sbr.rel (%p763) target = $region64
        $region63: #{tpu_custom_call.1} parent=39 // pred_region
          %s767 = ssub.s32 256, 256
          %768 = vsyncadd %s759, %s767
          %s769 = smul.addr %s26, 2
          %s770 = smul.addr %s769, 128
          %s771 = scalar_lea.hbm %s5, %s770
          %s773 = sshll.u32 %s762, 4
          %s774 = int_to_ptr.vmem [resolvable:$true] %s773
          %776 = dma.vmem_to_hbm [thread:$0]  %s774, 256, %s771, %s759
        $region64: #{tpu_custom_call.1} parent=39 // pred_fallthru
          _
      $region40: #{tpu_custom_call.1} parent=5 // pred_fallthru
        _
      %p777 = scmp.le.s32.totalorder 2, %s21
      // Predicated region
      $region65: #{tpu_custom_call.1} parent=5 // pred_check
        %p778 = pneg %p777
      $region66: #{tpu_custom_call.1} parent=5 // pred_check_branch
        %780 = sbr.rel (%p778) target = $region68
      $region67: #{tpu_custom_call.1} parent=5 // pred_region
        %s781 = ssub.s32 %s21, 2
        // Predicated region
        $region69: #{tpu_custom_call.1} parent=67 // pred_check
          %p782 = pneg %p165
        $region70: #{tpu_custom_call.1} parent=67 // pred_check_branch
          %784 = sbr.rel (%p782) target = $region72
        $region71: #{tpu_custom_call.1} parent=67 // pred_region
          %s785 = sand.u32 %s150, 1
          %s786 = scalar_lea.sflag [#allocation5], %s785
          %s787 = sand.u32 %s150, 1
          %s788 = smul.addr %s787, 16
          %s789 = scalar_lea.vmem [#allocation12], %s788
          %790 = dma.done %s786, 256
        $region72: #{tpu_custom_call.1} parent=67 // pred_fallthru
          _
      $region68: #{tpu_custom_call.1} parent=5 // pred_fallthru
        _
    $region6: #{tpu_custom_call.1} parent=1 // loop_footer
      %s25 = sadd.s32 1, %s21
    $region7: #{tpu_custom_call.1} parent=1 // loop_footer_branch
      %20 = sbr.rel target = $region3
    $region8: #{tpu_custom_call.1} parent=1 // loop_exit
      _
    %791 = vsyncpa [#allocation4], 1
    %s792 = scalar_lea.sflag [#allocation4], 1
    %793 = vsyncpa %s792, 1
    %794 = vsyncpa [#allocation7], 1
    %s795 = scalar_lea.sflag [#allocation7], 1
    %796 = vsyncpa %s795, 1
    %797 = vsyncpa [#allocation10], 1
    %798 = vsyncpa [#allocation5], 1
    %s799 = scalar_lea.sflag [#allocation5], 1
    %800 = vsyncpa %s799, 1

</llo_original>
